<compile_context>
chip_gen: v6e
topology: v6e:2x2x1
jax: 0.10.0
libtpu: 0.0.40
codegen_flags: <defaults>
</compile_context>

<pallas_src>
import jax
import jax.numpy as jnp
from jax.experimental import pallas as pl
from jax.experimental.pallas import tpu as pltpu

# torchvision Grayscale luminance weights
_W_R, _W_G, _W_B = 0.2989, 0.587, 0.114

_LANE = 128          # lane (fast) axis width
_S_TILE_TARGET = 1024  # sublane rows per block -> 3*1024*128*4B = 1.5 MiB input block


def _round_up(x, m):
    return (x + m - 1) // m * m


def _gray_kernel(x_ref, o_ref):
    # x_ref block: (1, 3, S_TILE, LANE)   o_ref block: (1, 1, S_TILE, LANE)
    r = x_ref[0, 0].astype(jnp.float32)            # dense (S_TILE, LANE) planes
    g = x_ref[0, 1].astype(jnp.float32)
    b = x_ref[0, 2].astype(jnp.float32)
    y = _W_R * r + _W_G * g + _W_B * b             # VPU elementwise; HBM-bound kernel
    if jnp.issubdtype(o_ref.dtype, jnp.integer):
        y = jnp.round(y)                           # match torch rounding for int frames
    o_ref[0, 0] = y.astype(o_ref.dtype)


def video_grayscale(video):
    """video: (N, C=3, T, H, W) -> (N, 1, T, H, W), same dtype."""
    N, C, T, H, W = video.shape
    assert C == 3, "Grayscale expects 3 input channels (RGB)"
    L = T * H * W

    # Free reshape: channel dim is already at axis 1 and the op is per-pixel.
    x = video.reshape(N, C, L)

    # Pad the flat pixel axis so it factors as (rows, 128) with rows a multiple
    # of the sublane tile (only when the shape demands it; demo shapes need none).
    rows = pl.cdiv(L, _LANE)
    s_tile = min(_S_TILE_TARGET, _round_up(rows, 8))
    rows_pad = _round_up(rows, s_tile)
    L_pad = rows_pad * _LANE
    if L_pad != L:
        x = jnp.pad(x, ((0, 0), (0, 0), (0, L_pad - L)))
    x = x.reshape(N, C, rows_pad, _LANE)

    grid = (N, rows_pad // s_tile)

    out = pl.pallas_call(
        _gray_kernel,
        out_shape=jax.ShapeDtypeStruct((N, 1, rows_pad, _LANE), video.dtype),
        grid_spec=pltpu.PrefetchScalarGridSpec(
            num_scalar_prefetch=0,
            grid=grid,
            in_specs=[pl.BlockSpec((1, C, s_tile, _LANE), lambda n, j: (n, 0, j, 0))],
            out_specs=pl.BlockSpec((1, 1, s_tile, _LANE), lambda n, j: (n, 0, j, 0)),
        ),
        compiler_params=pltpu.CompilerParams(
            # Both axes fully independent -> shardable across v7x's 2 TensorCores.
            dimension_semantics=("parallel", "parallel")),
    )(x)

    # Free reshapes back to (N, 1, T, H, W) (slice only if we padded).
    out = out.reshape(N, 1, L_pad)
    if L_pad != L:
        out = out[:, :, :L]
    return out.reshape(N, 1, T, H, W)


if __name__ == "__main__":
    key = jax.random.PRNGKey(0)
    N, C, T, H, W = 2, 3, 8, 16, 16          # small video: batch=2, RGB, 8 frames
    video = jax.random.uniform(key, (N, C, T, H, W), dtype=jnp.float32)

    out = video_grayscale(video)
    jax.block_until_ready(out)

    # Pure-JAX reference (same math as torchvision Grayscale over channel dim)
    ref = (_W_R * video[:, 0:1] + _W_G * video[:, 1:2] + _W_B * video[:, 2:3])
    assert out.shape == (N, 1, T, H, W), out.shape
    assert jnp.allclose(out, ref, atol=1e-6), "mismatch vs reference"

    print("KERNEL_OK")
</pallas_src>

<mosaic_0001>
module attributes {stable_mosaic.version = 11 : i64} {
  func.func @_gray_kernel(%arg0: i32, %arg1: i32, %arg2: memref<1x3x16x128xf32, #tpu.memory_space<vmem>>, %arg3: memref<1x1x16x128xf32, #tpu.memory_space<vmem>>) attributes {dimension_semantics = [#tpu.dimension_semantics<parallel>, #tpu.dimension_semantics<parallel>], iteration_bounds = array<i64: 2, 1>, scalar_prefetch = 0 : i64, scratch_operands = 0 : i64, tpu.core_type = #tpu.core_type<tc>, window_params = [{transform_indices = @transform_0, window_bounds = array<i64: 1, 3, 16, 128>}, {transform_indices = @transform_1, window_bounds = array<i64: 1, 1, 16, 128>}]} {
    %c0 = arith.constant 0 : index
    %c0_0 = arith.constant 0 : index
    %c0_1 = arith.constant 0 : index
    %c0_2 = arith.constant 0 : index
    %0 = vector.load %arg2[%c0, %c0_0, %c0_1, %c0_2] : memref<1x3x16x128xf32, #tpu.memory_space<vmem>>, vector<1x1x16x128xf32>
    %1 = vector.shape_cast %0 : vector<1x1x16x128xf32> to vector<16x128xf32>
    %c0_3 = arith.constant 0 : index
    %c1 = arith.constant 1 : index
    %c0_4 = arith.constant 0 : index
    %c0_5 = arith.constant 0 : index
    %2 = vector.load %arg2[%c0_3, %c1, %c0_4, %c0_5] : memref<1x3x16x128xf32, #tpu.memory_space<vmem>>, vector<1x1x16x128xf32>
    %3 = vector.shape_cast %2 : vector<1x1x16x128xf32> to vector<16x128xf32>
    %c0_6 = arith.constant 0 : index
    %c2 = arith.constant 2 : index
    %c0_7 = arith.constant 0 : index
    %c0_8 = arith.constant 0 : index
    %4 = vector.load %arg2[%c0_6, %c2, %c0_7, %c0_8] : memref<1x3x16x128xf32, #tpu.memory_space<vmem>>, vector<1x1x16x128xf32>
    %5 = vector.shape_cast %4 : vector<1x1x16x128xf32> to vector<16x128xf32>
    %cst = arith.constant 2.989000e-01 : f32
    %6 = vector.broadcast %cst : f32 to vector<16x128xf32>
    %7 = arith.mulf %6, %1 : vector<16x128xf32>
    %cst_9 = arith.constant 5.870000e-01 : f32
    %8 = vector.broadcast %cst_9 : f32 to vector<16x128xf32>
    %9 = arith.mulf %8, %3 : vector<16x128xf32>
    %10 = arith.addf %7, %9 : vector<16x128xf32>
    %cst_10 = arith.constant 1.140000e-01 : f32
    %11 = vector.broadcast %cst_10 : f32 to vector<16x128xf32>
    %12 = arith.mulf %11, %5 : vector<16x128xf32>
    %13 = arith.addf %10, %12 : vector<16x128xf32>
    %c0_11 = arith.constant 0 : index
    %c0_12 = arith.constant 0 : index
    %c0_13 = arith.constant 0 : index
    %c0_14 = arith.constant 0 : index
    %14 = vector.load %arg3[%c0_11, %c0_12, %c0_13, %c0_14] : memref<1x1x16x128xf32, #tpu.memory_space<vmem>>, vector<1x1x16x128xf32>
    %15 = vector.shape_cast %14 : vector<1x1x16x128xf32> to vector<16x128xf32>
    %16 = vector.shape_cast %13 : vector<16x128xf32> to vector<1x1x16x128xf32>
    tpu.vector_store %arg3[%c0_11, %c0_12, %c0_13, %c0_14], %16 {strides = array<i32>} : memref<1x1x16x128xf32, #tpu.memory_space<vmem>>, vector<1x1x16x128xf32>,
    return
  }
  func.func @transform_0(%arg0: i32, %arg1: i32) -> (i32, i32, i32, i32) {
    %c0_i32 = arith.constant 0 : i32
    %c0_i32_0 = arith.constant 0 : i32
    %c0_i32_1 = arith.constant 0 : i32
    return %arg0, %c0_i32, %arg1, %c0_i32_0 : i32, i32, i32, i32
  }
  func.func @transform_1(%arg0: i32, %arg1: i32) -> (i32, i32, i32, i32) {
    %c0_i32 = arith.constant 0 : i32
    %c0_i32_0 = arith.constant 0 : i32
    %c0_i32_1 = arith.constant 0 : i32
    return %arg0, %c0_i32, %arg1, %c0_i32_0 : i32, i32, i32, i32
  }
}

</mosaic_0001>

<llo_original>
// kernel: tpu_custom_call.1
$region0: #{tpu_custom_call.1}
  #allocation0 [shape = 'u32[]', space=smem, size = 0x4, offset = 0x4, fixed_abs, tag = 'smem constant byte address 0x4 - core index']
  #allocation1 [shape = 'u32[144,128]{1,0:T(1,128)}', space=vmem, size = 0x12000, scoped, tag = 'internal scratch']
  %s0 = inlined_call_operand.hbm [shape: f32[2,3,16,128], index: 0, kind: input, shape index: {}]
  %s1 = inlined_call_operand.hbm [shape: f32[2,1,16,128], index: 1, kind: output, shape index: {}]
  %s2 = sld [smem:[#allocation0]]
  $region41: #{tpu_custom_call.1} parent=0
    _
  %s4 = ssub.s32 1, %s2
  %s5 = scalar_select 0, %s4, %s2
  $region1: #{tpu_custom_call.1} parent=0
    #allocation2 [shape = 'u8[49152]{0}', space=vmem, size = 0xc000, scoped, tag = 'input window, operand 0']
    #allocation3 [shape = 's32[2]{0}', space=sflag, size = 0x8, scoped, tag = 'scoped memory for tpu_custom_call.1']
    #allocation4 [shape = 's32[2]{0}', space=sflag, size = 0x8, scoped, tag = 'scoped memory for tpu_custom_call.1']
    #allocation5 [shape = 'u8[16384]{0}', space=vmem, size = 0x4000, scoped, tag = 'output window, operand 0']
    %6 = vsyncpa [#allocation3], 0
    %s7 = scalar_lea.sflag [#allocation3], 1
    %8 = vsyncpa %s7, 0
    %9 = vsyncpa [#allocation4], 0
    %s10 = scalar_lea.sflag [#allocation4], 1
    %11 = vsyncpa %s10, 0
    loop: start=0, step=1, limit=4
    $region2: #{tpu_custom_call.1} parent=1 // loop_pre_header
      _
    $region3: #{tpu_custom_call.1} parent=1 // loop_header
      %s13 = sphi 0, %s17
      %p14 = scmp.ge.s32.totalorder %s13, 4
      %s20 = sphi 0, %s32
      %s21 = sphi 0, %s28
      %s22 = sphi 0, %s20
      %s23 = sphi 0, %s21
      %s24 = sphi 0, %s22
      %s25 = sphi 0, %s23
      %s37 = sphi 0, %s39
      %s40 = sphi 0, %s37
      %s41 = sphi 0, %s40
      %s57 = sphi 0, %s41
      %s65 = sphi 0, %s67
      %s68 = sphi 0, %s65
      %s69 = sphi 0, %s68
      %s85 = sphi 0, %s69
    $region4: #{tpu_custom_call.1} parent=1 // loop_header_branch
      %16 = sbr.rel (%p14) target = $region8
    $region5: #{tpu_custom_call.1} parent=1 // loop_body
      %s18 = ssub.s32 %s13, 1
      %s19 = ssub.s32 %s13, 2
      %s26 = sadd.s32 1, %s21
      %p27 = scmp.ge.s32.totalorder %s26, 1
      %s28 = scalar_select %p27, 0, %s26
      %s29 = sadd.s32 1, %s20
      %s30 = scalar_select %p27, %s29, %s20
      %p31 = scmp.ge.s32.totalorder %s30, 2
      %s32 = scalar_select %p31, 0, %s30
      %s33 = ssub.s32 %s20, %s32
      %s34 = ssub.s32 %s21, %s28
      %s35 = sor.u32 %s33, %s34
      %p36 = scmp.eq.s32.totalorder %s35, 0
      %s38 = sadd.s32 %s37, 1
      %s39 = scalar_select %p36, %s37, %s38
      %p42 = pneg %p36
      %p43 = scmp.eq.s32.totalorder %s13, 1
      %p44 = por %p42, %p43
      %p45 = scmp.ne.s32.totalorder %s37, %s40
      %p46 = scmp.eq.s32.totalorder %s13, 0
      %p47 = por %p45, %p46
      %p48 = scmp.ne.s32.totalorder %s37, %s40
      %p49 = scmp.eq.s32.totalorder %s18, 1
      %p50 = por %p48, %p49
      %p51 = scmp.ne.s32.totalorder %s40, %s41
      %p52 = scmp.eq.s32.totalorder %s18, 0
      %p53 = por %p51, %p52
      %p54 = scmp.ne.s32.totalorder %s40, %s41
      %p55 = scmp.eq.s32.totalorder %s19, 1
      %p56 = por %p54, %p55
      %p58 = scmp.ne.s32.totalorder %s41, %s57
      %p59 = scmp.eq.s32.totalorder %s19, 0
      %p60 = por %p58, %p59
      %s61 = ssub.s32 %s20, %s32
      %s62 = ssub.s32 %s21, %s28
      %s63 = sor.u32 %s61, %s62
      %p64 = scmp.eq.s32.totalorder %s63, 0
      %s66 = sadd.s32 %s65, 1
      %s67 = scalar_select %p64, %s65, %s66
      %p70 = pneg %p64
      %p71 = scmp.eq.s32.totalorder %s13, 1
      %p72 = por %p70, %p71
      %p73 = scmp.ne.s32.totalorder %s65, %s68
      %p74 = scmp.eq.s32.totalorder %s13, 0
      %p75 = por %p73, %p74
      %p76 = scmp.ne.s32.totalorder %s65, %s68
      %p77 = scmp.eq.s32.totalorder %s18, 1
      %p78 = por %p76, %p77
      %p79 = scmp.ne.s32.totalorder %s68, %s69
      %p80 = scmp.eq.s32.totalorder %s18, 0
      %p81 = por %p79, %p80
      %p82 = scmp.ne.s32.totalorder %s68, %s69
      %p83 = scmp.eq.s32.totalorder %s19, 1
      %p84 = por %p82, %p83
      %p86 = scmp.ne.s32.totalorder %s69, %s85
      %p87 = scmp.eq.s32.totalorder %s19, 0
      %p88 = por %p86, %p87
      %p89 = scmp.le.s32.totalorder 1, %s13
      %p90 = scmp.lt.s32.totalorder %s13, 3
      %p91 = pnand %p89, %p90
      %p92 = pneg %p91
      // Predicated region
      $region9: #{tpu_custom_call.1} parent=5 // pred_check
        _
      $region10: #{tpu_custom_call.1} parent=5 // pred_check_branch
        %94 = sbr.rel (%p91) target = $region12
      $region11: #{tpu_custom_call.1} parent=5 // pred_region
        %s95 = ssub.s32 %s13, 1
      $region12: #{tpu_custom_call.1} parent=5 // pred_fallthru
        _
      %p96 = scmp.lt.s32.totalorder %s13, 2
      // Predicated region
      $region13: #{tpu_custom_call.1} parent=5 // pred_check
        %p97 = pneg %p96
      $region14: #{tpu_custom_call.1} parent=5 // pred_check_branch
        %99 = sbr.rel (%p97) target = $region16
      $region15: #{tpu_custom_call.1} parent=5 // pred_region
        // Predicated region
        $region17: #{tpu_custom_call.1} parent=15 // pred_check
          %p100 = pneg %p47
        $region18: #{tpu_custom_call.1} parent=15 // pred_check_branch
          %102 = sbr.rel (%p100) target = $region20
        $region19: #{tpu_custom_call.1} parent=15 // pred_region
          %s103 = sand.u32 %s37, 1
          %s104 = scalar_lea.sflag [#allocation3], %s103
          %s105 = sand.u32 %s37, 1
          %s106 = smul.addr %s105, 48
          %s107 = scalar_lea.vmem [#allocation2], %s106
          %s108 = smul.u32 2, %s21
          %s110 = ssub.s32 768, 768
          %111 = vsyncadd %s104, %s110
          %s112 = smul.addr %s20, 6
          %s113 = sadd.s32 %s108, %s112
          %s114 = smul.addr %s113, 128
          %s115 = scalar_lea.hbm %s0, %s114
          %s116 = sshll.u32 %s107, 4
          %s117 = int_to_ptr.vmem [resolvable:$true] %s116
          %122 = dma.hbm_to_vmem [thread:$0]  %s115, 768, %s117, %s104, 128, 128, 8
        $region20: #{tpu_custom_call.1} parent=15 // pred_fallthru
          _
      $region16: #{tpu_custom_call.1} parent=5 // pred_fallthru
        _
      %p123 = scmp.le.s32.totalorder 1, %s13
      %p124 = scmp.lt.s32.totalorder %s13, 3
      %p125 = pnand %p123, %p124
      %p126 = pneg %p125
      // Predicated region
      $region21: #{tpu_custom_call.1} parent=5 // pred_check
        _
      $region22: #{tpu_custom_call.1} parent=5 // pred_check_branch
        %128 = sbr.rel (%p125) target = $region24
      $region23: #{tpu_custom_call.1} parent=5 // pred_region
        %s129 = ssub.s32 %s13, 1
        %s130 = sand.u32 %s40, 1
        %s131 = scalar_lea.sflag [#allocation3], %s130
        %s132 = sand.u32 %s40, 1
        %s133 = smul.addr %s132, 48
        %s134 = scalar_lea.vmem [#allocation2], %s133
        // Predicated region
        $region25: #{tpu_custom_call.1} parent=23 // pred_check
          %p135 = pneg %p53
        $region26: #{tpu_custom_call.1} parent=23 // pred_check_branch
          %137 = sbr.rel (%p135) target = $region28
        $region27: #{tpu_custom_call.1} parent=23 // pred_region
          %138 = dma.done %s131, 768
        $region28: #{tpu_custom_call.1} parent=23 // pred_fallthru
          _
        %s139 = sand.u32 %s40, 1
        %s140 = scalar_lea.sflag [#allocation3], %s139
        %s141 = sand.u32 %s40, 1
        %s142 = smul.addr %s141, 48
        %s143 = scalar_lea.vmem [#allocation2], %s142
        %p144 = pneg %p53
        %p145 = pneg %p50
        %p146 = pneg %p81
        %p147 = pneg %p78
        %s148 = sand.u32 %s68, 1
        %s149 = scalar_lea.sflag [#allocation4], %s148
        %s150 = sand.u32 %s68, 1
        %s151 = smul.addr %s150, 16
        %s152 = scalar_lea.vmem [#allocation5], %s151
        %s153 = smul.u32 2, %s23
        %s154 = smul.u32 2, %s23
        %v155 = vld [vmem:[%s134] sm:$0xff]
        %v156 = vld [vmem:[%s134 + $0x8] sm:$0xff]
        %s157 = scalar_lea.vmem %s134, 16 [#allocation2]
        %v158 = vld [vmem:[%s157] sm:$0xff]
        %v159 = vld [vmem:[%s157 + $0x8] sm:$0xff]
        %s160 = scalar_lea.vmem %s134, 32 [#allocation2]
        %v161 = vld [vmem:[%s160] sm:$0xff]
        %v162 = vld [vmem:[%s160 + $0x8] sm:$0xff]
        %v163 = vmul.f32 %v155, 0.2989
        %v164 = vmul.f32 %v156, 0.2989
        %v165 = vmul.f32 %v158, 0.587
        %v166 = vmul.f32 %v159, 0.587
        %v167 = vadd.f32 %v163, %v165
        %v168 = vadd.f32 %v164, %v166
        %v169 = vmul.f32 %v161, 0.114
        %v170 = vmul.f32 %v162, 0.114
        %v171 = vadd.f32 %v167, %v169
        %v172 = vadd.f32 %v168, %v170
        %173 = vst [vmem:[%s152] sm:$0xff] %v171
        %174 = vst [vmem:[%s152 + $0x8] sm:$0xff] %v172
        %s175 = sand.u32 %s68, 1
        %s176 = scalar_lea.sflag [#allocation4], %s175
        %s177 = sand.u32 %s68, 1
        %s178 = smul.addr %s177, 16
        %s179 = scalar_lea.vmem [#allocation5], %s178
        // Predicated region
        $region29: #{tpu_custom_call.1} parent=23 // pred_check
          %p180 = pneg %p78
        $region30: #{tpu_custom_call.1} parent=23 // pred_check_branch
          %182 = sbr.rel (%p180) target = $region32
        $region31: #{tpu_custom_call.1} parent=23 // pred_region
          %s183 = smul.u32 2, %s23
          %s185 = ssub.s32 256, 256
          %186 = vsyncadd %s176, %s185
          %s187 = smul.addr %s22, 2
          %s188 = sadd.s32 %s183, %s187
          %s189 = smul.addr %s188, 128
          %s190 = scalar_lea.hbm %s1, %s189
          %s191 = sshll.u32 %s179, 4
          %s192 = int_to_ptr.vmem [resolvable:$true] %s191
          %197 = dma.vmem_to_hbm [thread:$0]  %s192, 256, %s190, %s176, 128, 128, 8
        $region32: #{tpu_custom_call.1} parent=23 // pred_fallthru
          _
      $region24: #{tpu_custom_call.1} parent=5 // pred_fallthru
        _
      %p198 = scmp.le.s32.totalorder 2, %s13
      // Predicated region
      $region33: #{tpu_custom_call.1} parent=5 // pred_check
        %p199 = pneg %p198
      $region34: #{tpu_custom_call.1} parent=5 // pred_check_branch
        %201 = sbr.rel (%p199) target = $region36
      $region35: #{tpu_custom_call.1} parent=5 // pred_region
        %s202 = ssub.s32 %s13, 2
        // Predicated region
        $region37: #{tpu_custom_call.1} parent=35 // pred_check
          %p203 = pneg %p84
        $region38: #{tpu_custom_call.1} parent=35 // pred_check_branch
          %205 = sbr.rel (%p203) target = $region40
        $region39: #{tpu_custom_call.1} parent=35 // pred_region
          %s206 = sand.u32 %s69, 1
          %s207 = scalar_lea.sflag [#allocation4], %s206
          %s208 = sand.u32 %s69, 1
          %s209 = smul.addr %s208, 16
          %s210 = scalar_lea.vmem [#allocation5], %s209
          %211 = dma.done %s207, 256
        $region40: #{tpu_custom_call.1} parent=35 // pred_fallthru
          _
      $region36: #{tpu_custom_call.1} parent=5 // pred_fallthru
        _
    $region6: #{tpu_custom_call.1} parent=1 // loop_footer
      %s17 = sadd.s32 1, %s13
    $region7: #{tpu_custom_call.1} parent=1 // loop_footer_branch
      %12 = sbr.rel target = $region3
    $region8: #{tpu_custom_call.1} parent=1 // loop_exit
      _
    %212 = vsyncpa [#allocation3], 1
    %s213 = scalar_lea.sflag [#allocation3], 1
    %214 = vsyncpa %s213, 1
    %215 = vsyncpa [#allocation4], 1
    %s216 = scalar_lea.sflag [#allocation4], 1
    %217 = vsyncpa %s216, 1

</llo_original>
